<compile_context>
chip_gen: v6e
topology: v6e:2x2x1
jax: 0.10.0
libtpu: 0.0.40
codegen_flags: <defaults>
</compile_context>

<pallas_src>
import jax
import jax.numpy as jnp
from jax import lax
from jax.experimental import pallas as pl
from jax.experimental.pallas import tpu as pltpu

_LANES = 128
_MAX_ROW_TILE = 1024            # ~4-8 MiB double-buffered blocks: fine on v5e/v6e/v7x
_VMEM_LIMIT = 48 * 1024 * 1024


def _pick_tiling(rows, max_rows=_MAX_ROW_TILE):
    """Return (row_tile, padded_rows).

    Prefers the largest multiple-of-8 tile <= max_rows dividing `rows`; if
    none exists the row axis is padded up to a multiple of max_rows so the
    grid stays pipelined (never a single huge block)."""
    if rows <= max_rows:
        return rows, rows
    t = (max_rows // 8) * 8
    for cand in range(t, 7, -8):
        if rows % cand == 0:
            return cand, rows
    padded = pl.cdiv(rows, t) * t
    return t, padded


# --------------------------------------------------------------------------
# Kernel A: fused synthetic depth network (1x1 conv + inverse depth) and
#           project_to_3d, emitting UNNORMALIZED points + per-tile depth psum.
# --------------------------------------------------------------------------
def _depth_project_kernel(w_ref, b_ref, rv_ref, xdyd_ref, x_ref,
                          pts_ref, psum_ref):
    # x_ref: (1, C, TM, 128); xdyd_ref: (2, TM, 128)
    # pts_ref: (1, 3, TM, 128) unnormalized points; psum_ref: (1, 1, 1, 128)
    t = pl.program_id(0)
    C = x_ref.shape[1]
    TM = x_ref.shape[2]
    # TODO(synk): if the stand-in conv ever grows beyond C=3, replace this
    # unrolled channel loop with a single (TM*128, C) @ (C, 1) contraction.
    acc = x_ref[0, 0] * w_ref[0]
    for c in range(1, C):
        acc = acc + x_ref[0, c] * w_ref[c]
    acc = acc + b_ref[0]
    # depth_model = 1000 / (net(x) + 0.1)
    d = 1000.0 * pl.reciprocal(acc + 0.1, approx=False)
    pts_ref[0, 0] = xdyd_ref[0] * d
    pts_ref[0, 1] = xdyd_ref[1] * d
    pts_ref[0, 2] = d
    # per-(image, tile) partial depth sum; rows beyond the valid extent
    # (zero-padded tail) are masked out.
    rows = lax.broadcasted_iota(jnp.int32, (TM, _LANES), 0) + t * TM
    dm = jnp.where(rows < rv_ref[0], d, 0.0)
    psum_ref[0, 0] = jnp.sum(dm, axis=0, keepdims=True)


def depth_project_pallas(x_flat, xdyd, conv_w, conv_b, rows_valid, tm):
    N, C, Rp, L = x_flat.shape
    nt = Rp // tm
    rv = jnp.asarray([rows_valid], jnp.int32)
    return pl.pallas_call(
        _depth_project_kernel,
        out_shape=(jax.ShapeDtypeStruct((N, 3, Rp, L), jnp.float32),
                   jax.ShapeDtypeStruct((N, nt, 1, L), jnp.float32)),
        grid=(nt, N),     # tile axis outermost -> xdyd DMA reused across n
        in_specs=[
            pl.BlockSpec(memory_space=pltpu.MemorySpace.SMEM),
            pl.BlockSpec(memory_space=pltpu.MemorySpace.SMEM),
            pl.BlockSpec(memory_space=pltpu.MemorySpace.SMEM),
            pl.BlockSpec((2, tm, L), lambda t, n: (0, t, 0)),
            pl.BlockSpec((1, C, tm, L), lambda t, n: (n, 0, t, 0)),
        ],
        out_specs=(pl.BlockSpec((1, 3, tm, L), lambda t, n: (n, 0, t, 0)),
                   pl.BlockSpec((1, 1, 1, L), lambda t, n: (n, t, 0, 0))),
        compiler_params=pltpu.CompilerParams(
            dimension_semantics=("parallel", "parallel"),
            vmem_limit_bytes=_VMEM_LIMIT),
    )(conv_w, conv_b, rv, xdyd, x_flat)


# --------------------------------------------------------------------------
# Kernel B: extended weighted Procrustes moments, batched over flow pairs and
#           tiled over points.  Pure VPU muls + sublane reductions; per-tile
#           partial outputs (no cross-step accumulation -> fully parallel).
# mom rows: 0..8  = sum w*p2[a]*p1[b]  (row-major a,b)
#           9..11 = sum w*p1,  12..14 = sum w*p2,  15 = sum w
#           16    = sum w*|p1|^2,      17 = sum w*|p2|^2
# --------------------------------------------------------------------------
def _procrustes_stats_kernel(w_ref, p1_ref, p2_ref, mom_ref):
    w = w_ref[0, 0]                                    # (TM, 128)
    p1 = [p1_ref[0, a] for a in range(3)]
    p2 = [p2_ref[0, a] for a in range(3)]
    wp1 = [w * p1[a] for a in range(3)]
    wp2 = [w * p2[a] for a in range(3)]

    def put(row, val2d):                               # direct row store
        mom_ref[0, 0, row:row + 1, :] = val2d

    for a in range(3):
        for b in range(3):
            put(3 * a + b, jnp.sum(wp2[a] * p1[b], axis=0, keepdims=True))
    for a in range(3):
        put(9 + a, jnp.sum(wp1[a], axis=0, keepdims=True))
        put(12 + a, jnp.sum(wp2[a], axis=0, keepdims=True))
    put(15, jnp.sum(w, axis=0, keepdims=True))
    put(16, jnp.sum(wp1[0] * p1[0] + wp1[1] * p1[1] + wp1[2] * p1[2],
                    axis=0, keepdims=True))
    put(17, jnp.sum(wp2[0] * p2[0] + wp2[1] * p2[1] + wp2[2] * p2[2],
                    axis=0, keepdims=True))


def procrustes_stats_pallas(wts, p1, p2, tm):
    P, _, Rp, L = p1.shape
    nt = Rp // tm
    return pl.pallas_call(
        _procrustes_stats_kernel,
        out_shape=jax.ShapeDtypeStruct((P, nt, 18, L), jnp.float32),
        grid=(P, nt),
        in_specs=[
            pl.BlockSpec((1, 1, tm, L), lambda p, t: (p, 0, t, 0)),
            pl.BlockSpec((1, 3, tm, L), lambda p, t: (p, 0, t, 0)),
            pl.BlockSpec((1, 3, tm, L), lambda p, t: (p, 0, t, 0)),
        ],
        out_specs=pl.BlockSpec((1, 1, 18, L), lambda p, t: (p, t, 0, 0)),
        compiler_params=pltpu.CompilerParams(
            dimension_semantics=("parallel", "parallel"),
            vmem_limit_bytes=_VMEM_LIMIT),
    )(wts, p1, p2)


# --------------------------------------------------------------------------
# JAX glue: bilinear grid_sample (padding_mode='border', align_corners=False)
# with single linear-index gathers per corner.
# TODO(synk): data-dependent gather has no clean Pallas equivalent; plain JAX.
# --------------------------------------------------------------------------
def _bilinear_sample_border(pts_cf, gx, gy, H, W):
    # pts_cf: (3, H*W) flattened channel-major points
    px = jnp.clip(gx, 0.0, W - 1.0)
    py = jnp.clip(gy, 0.0, H - 1.0)
    x0 = jnp.floor(px)
    y0 = jnp.floor(py)
    wx1 = px - x0
    wy1 = py - y0
    wx0 = 1.0 - wx1
    wy0 = 1.0 - wy1
    x0i = jnp.clip(x0, 0, W - 1).astype(jnp.int32)
    x1i = jnp.clip(x0 + 1.0, 0, W - 1).astype(jnp.int32)
    y0i = jnp.clip(y0, 0, H - 1).astype(jnp.int32)
    y1i = jnp.clip(y0 + 1.0, 0, H - 1).astype(jnp.int32)
    v00 = jnp.take(pts_cf, y0i * W + x0i, axis=-1)
    v01 = jnp.take(pts_cf, y0i * W + x1i, axis=-1)
    v10 = jnp.take(pts_cf, y1i * W + x0i, axis=-1)
    v11 = jnp.take(pts_cf, y1i * W + x1i, axis=-1)
    return (v00 * (wy0 * wx0) + v01 * (wy0 * wx1)
            + v10 * (wy1 * wx0) + v11 * (wy1 * wx1))


def _sample_pair(p1_cf, p2_cf, flow12, H, W):
    yy, xx = jnp.meshgrid(jnp.arange(H, dtype=jnp.float32) + 0.5,
                          jnp.arange(W, dtype=jnp.float32) + 0.5,
                          indexing='ij')
    g1x, g1y = xx.ravel(), yy.ravel()
    g2x = (xx + flow12[0]).ravel()
    g2y = (yy + flow12[1]).ravel()

    # torch: g_norm = 2*g/(dim-1)-1;  grid_sample(align_corners=False)
    # unnormalizes with ((g_norm+1)*dim - 1)/2  ==  g*dim/(dim-1) - 0.5.
    def unnorm(g, size):
        return g * size / (size - 1.0) - 0.5

    p1s = _bilinear_sample_border(p1_cf, unnorm(g1x, W), unnorm(g1y, H), H, W)
    p2s = _bilinear_sample_border(p2_cf, unnorm(g2x, W), unnorm(g2y, H), H, W)
    return p1s, p2s


# --------------------------------------------------------------------------
# The flowmap model wrapper
# --------------------------------------------------------------------------
class FlowMapPallas:
    def __init__(self, n_images, height, width):
        self.n_images = n_images
        self.height = height
        self.width = width
        hw = height * width
        # TODO(synk): pad H*W to a multiple of 128 for arbitrary image sizes.
        assert hw % _LANES == 0, "H*W must be a multiple of 128"
        self.R = hw // _LANES
        f = 0.75 * float(hw ** 0.5)
        self.camera_f = jnp.array([f, f], jnp.float32)
        self.camera_c = jnp.array([0.5 * width, 0.5 * height], jnp.float32)
        self.camera_dist = jnp.zeros(4, jnp.float32)
        # deterministic stand-in depth-net parameters (1x1 conv)
        self.conv_w = jnp.array([0.3, 0.5, 0.2], jnp.float32)
        self.conv_b = jnp.array([0.1], jnp.float32)

    def _undistort_grid(self):
        # Loop-invariant undistortion coefficients (xd, yd): computed once in
        # JAX, streamed as a tiled Pallas input (block index constant across
        # the inner image axis -> its DMA is reused per tile).
        H, W = self.height, self.width
        fx, fy = self.camera_f[0], self.camera_f[1]
        cx, cy = self.camera_c[0], self.camera_c[1]
        k1, k2, p1, p2 = (self.camera_dist[0], self.camera_dist[1],
                          self.camera_dist[2], self.camera_dist[3])
        xg = jnp.arange(W, dtype=jnp.float32) + 0.5
        yg = jnp.arange(H, dtype=jnp.float32) + 0.5
        x = jnp.broadcast_to((xg[None, :] - cx) / fx, (H, W))
        y = jnp.broadcast_to((yg[:, None] - cy) / fy, (H, W))
        r2 = x * x + y * y
        dist = 1.0 + k1 * r2 + k2 * r2 * r2
        xd = x * dist + 2.0 * p1 * x * y + p2 * (r2 + 2.0 * x * x)
        yd = y * dist + 2.0 * p2 * x * y + p1 * (r2 + 2.0 * y * y)
        return jnp.stack([xd, yd], axis=0).reshape(2, self.R, _LANES)

    @staticmethod
    def _pad_rows(a, axis, rp):
        r = a.shape[axis]
        if r == rp:
            return a
        pad = [(0, 0)] * a.ndim
        pad[axis] = (0, rp - r)
        return jnp.pad(a, pad)

    def forward(self, images, flows, returnv='loss'):
        N, C, H, W = images.shape
        assert C == self.conv_w.shape[0]
        R = self.R
        tm, Rp = _pick_tiling(R)

        x_flat = self._pad_rows(images.reshape(N, C, R, _LANES), 2, Rp)
        xdyd = self._pad_rows(self._undistort_grid(), 1, Rp)

        # Fused depth-net + project_to_3d: unnormalized points + depth psums.
        pts_u, psum = depth_project_pallas(x_flat, xdyd, self.conv_w,
                                           self.conv_b, R, tm)
        total = jnp.sum(psum)                       # tiny (N, nt, 1, 128) reduce
        inv_mean = jnp.float32(N * H * W) / total   # deferred 1/mean(depth)

        if returnv == 'depths':
            return (pts_u[:, 2, :R, :] * inv_mean).reshape(N, H, W)
        if returnv == 'points':
            pts = (pts_u[:, :, :R, :] * inv_mean).reshape(N, 3, H, W)
            return jnp.transpose(pts, (0, 2, 3, 1))            # (N, H, W, 3)

        # ---------------- loss path: batched over all flow pairs ------------
        pts_cf = pts_u[:, :, :R, :].reshape(N, 3, H * W)       # unnormalized
        pairs = list(flows.items())
        P = len(pairs)
        p1_list, p2_list, w_list = [], [], []
        for (i, j), (flow, mask) in pairs:
            p1s, p2s = _sample_pair(pts_cf[i], pts_cf[j], flow, H, W)
            p1_list.append(p1s)
            p2_list.append(p2s)
            w_list.append(mask.astype(jnp.float32).reshape(-1))
        p1_all = self._pad_rows(jnp.stack(p1_list).reshape(P, 3, R, _LANES), 2, Rp)
        p2_all = self._pad_rows(jnp.stack(p2_list).reshape(P, 3, R, _LANES), 2, Rp)
        w_all = self._pad_rows(jnp.stack(w_list).reshape(P, 1, R, _LANES), 2, Rp)

        mom = procrustes_stats_pallas(w_all, p1_all, p2_all, tm)  # (P,nt,18,128)
        sums = jnp.sum(mom, axis=(1, 3))                          # (P, 18)

        # Fold the deferred 1/mean(depth) scale into the moments analytically.
        inv2 = inv_mean * inv_mean
        S12 = sums[:, :9].reshape(P, 3, 3) * inv2
        s1 = sums[:, 9:12] * inv_mean
        s2 = sums[:, 12:15] * inv_mean
        sw = jnp.maximum(sums[:, 15], 1e-8)            # guard vs. empty masks
        Tw1 = sums[:, 16] * inv2
        Tw2 = sums[:, 17] * inv2

        cov = S12 - s2[:, :, None] * s1[:, None, :] / sw[:, None, None]

        # TODO(synk): 3x3 SVD has no Pallas equivalent; batched jnp.linalg.svd.
        U, _, Vh = jnp.linalg.svd(cov)
        sgn = jnp.sign(jnp.linalg.det(U) * jnp.linalg.det(Vh))    # (P,)
        diag = jnp.stack([jnp.ones_like(sgn), jnp.ones_like(sgn), sgn], -1)
        S = jnp.eye(3, dtype=jnp.float32)[None] * diag[:, None, :]
        Rm = (U @ S @ Vh).astype(jnp.float32)                     # (P, 3, 3)
        # (translation t = c2 - R c1 cancels out of the closed-form loss.)

        # Closed-form residual loss from extended moments (exact for
        # orthonormal R):  sum_n w ||R p1 + t - p2||^2
        #   = (Tw1 - |s1|^2/sw) + (Tw2 - |s2|^2/sw) - 2 <R, cov>_F
        # NOTE: difference of large terms -> can lose precision when residuals
        # are tiny relative to point magnitudes; clamped at 0 below.
        Tc1 = Tw1 - jnp.sum(s1 * s1, axis=-1) / sw
        Tc2 = Tw2 - jnp.sum(s2 * s2, axis=-1) / sw
        rcov = jnp.einsum('pab,pab->p', Rm, cov)
        loss_num = jnp.maximum(Tc1 + Tc2 - 2.0 * rcov, 0.0)
        loss_per_pair = loss_num / (3.0 * sw)
        return jnp.sum(loss_per_pair) / P


# --------------------------------------------------------------------------
if __name__ == "__main__":
    N, C, H, W = 2, 3, 16, 16
    key = jax.random.PRNGKey(0)
    k_img, k_flow, k_mask = jax.random.split(key, 3)
    images = jax.random.uniform(k_img, (N, C, H, W), jnp.float32)
    flow = jax.random.normal(k_flow, (2, H, W), jnp.float32) * 0.5
    mask = (jax.random.uniform(k_mask, (H, W)) > 0.3).astype(jnp.float32)
    mask = mask.at[0, 0].set(1.0)   # guarantee at least one valid pixel
    flows = {(0, 1): (flow, mask)}

    model = FlowMapPallas(N, H, W)
    loss = model.forward(images, flows, returnv='loss')
    jax.block_until_ready(loss)
    print("KERNEL_OK")
</pallas_src>

<mosaic_0001>
module attributes {stable_mosaic.version = 11 : i64} {
  func.func @_depth_project_kernel(%arg0: i32, %arg1: i32, %arg2: memref<3xf32, #tpu.memory_space<smem>>, %arg3: memref<1xf32, #tpu.memory_space<smem>>, %arg4: memref<1xi32, #tpu.memory_space<smem>>, %arg5: memref<2x2x128xf32, #tpu.memory_space<vmem>>, %arg6: memref<1x3x2x128xf32, #tpu.memory_space<vmem>>, %arg7: memref<1x3x2x128xf32, #tpu.memory_space<vmem>>, %arg8: memref<1x1x1x128xf32, #tpu.memory_space<vmem>>) attributes {dimension_semantics = [#tpu.dimension_semantics<parallel>, #tpu.dimension_semantics<parallel>], iteration_bounds = array<i64: 1, 2>, scalar_prefetch = 0 : i64, scratch_operands = 0 : i64, tpu.core_type = #tpu.core_type<tc>, window_params = [{transform_indices = @transform_0, window_bounds = array<i64: 3>}, {transform_indices = @transform_1, window_bounds = array<i64: 1>}, {transform_indices = @transform_2, window_bounds = array<i64: 1>}, {transform_indices = @transform_3, window_bounds = array<i64: 2, 2, 128>}, {transform_indices = @transform_4, window_bounds = array<i64: 1, 3, 2, 128>}, {transform_indices = @transform_5, window_bounds = array<i64: 1, 3, 2, 128>}, {transform_indices = @transform_6, window_bounds = array<i64: 1, 1, 1, 128>}]} {
    %c0 = arith.constant 0 : index
    %c0_0 = arith.constant 0 : index
    %c0_1 = arith.constant 0 : index
    %c0_2 = arith.constant 0 : index
    %0 = vector.load %arg6[%c0, %c0_0, %c0_1, %c0_2] : memref<1x3x2x128xf32, #tpu.memory_space<vmem>>, vector<1x1x2x128xf32>
    %1 = vector.shape_cast %0 : vector<1x1x2x128xf32> to vector<2x128xf32>
    %c0_3 = arith.constant 0 : index
    %2 = memref.load %arg2[%c0_3] : memref<3xf32, #tpu.memory_space<smem>>
    %3 = vector.broadcast %2 : f32 to vector<2x128xf32>
    %4 = arith.mulf %1, %3 : vector<2x128xf32>
    %c0_4 = arith.constant 0 : index
    %c1 = arith.constant 1 : index
    %c0_5 = arith.constant 0 : index
    %c0_6 = arith.constant 0 : index
    %5 = vector.load %arg6[%c0_4, %c1, %c0_5, %c0_6] : memref<1x3x2x128xf32, #tpu.memory_space<vmem>>, vector<1x1x2x128xf32>
    %6 = vector.shape_cast %5 : vector<1x1x2x128xf32> to vector<2x128xf32>
    %c1_7 = arith.constant 1 : index
    %7 = memref.load %arg2[%c1_7] : memref<3xf32, #tpu.memory_space<smem>>
    %8 = vector.broadcast %7 : f32 to vector<2x128xf32>
    %9 = arith.mulf %6, %8 : vector<2x128xf32>
    %10 = arith.addf %4, %9 : vector<2x128xf32>
    %c0_8 = arith.constant 0 : index
    %c2 = arith.constant 2 : index
    %c0_9 = arith.constant 0 : index
    %c0_10 = arith.constant 0 : index
    %11 = vector.load %arg6[%c0_8, %c2, %c0_9, %c0_10] : memref<1x3x2x128xf32, #tpu.memory_space<vmem>>, vector<1x1x2x128xf32>
    %12 = vector.shape_cast %11 : vector<1x1x2x128xf32> to vector<2x128xf32>
    %c2_11 = arith.constant 2 : index
    %13 = memref.load %arg2[%c2_11] : memref<3xf32, #tpu.memory_space<smem>>
    %14 = vector.broadcast %13 : f32 to vector<2x128xf32>
    %15 = arith.mulf %12, %14 : vector<2x128xf32>
    %16 = arith.addf %10, %15 : vector<2x128xf32>
    %c0_12 = arith.constant 0 : index
    %17 = memref.load %arg3[%c0_12] : memref<1xf32, #tpu.memory_space<smem>>
    %18 = vector.broadcast %17 : f32 to vector<2x128xf32>
    %19 = arith.addf %16, %18 : vector<2x128xf32>
    %cst = arith.constant 1.000000e-01 : f32
    %20 = vector.broadcast %cst : f32 to vector<2x128xf32>
    %21 = arith.addf %19, %20 : vector<2x128xf32>
    %22 = tpu.reciprocal %21 : vector<2x128xf32> -> vector<2x128xf32>
    %cst_13 = arith.constant 1.000000e+03 : f32
    %23 = vector.broadcast %cst_13 : f32 to vector<2x128xf32>
    %24 = arith.mulf %23, %22 : vector<2x128xf32>
    %c0_14 = arith.constant 0 : index
    %c0_15 = arith.constant 0 : index
    %c0_16 = arith.constant 0 : index
    %25 = vector.load %arg5[%c0_14, %c0_15, %c0_16] : memref<2x2x128xf32, #tpu.memory_space<vmem>>, vector<1x2x128xf32>
    %26 = vector.shape_cast %25 : vector<1x2x128xf32> to vector<2x128xf32>
    %27 = arith.mulf %26, %24 : vector<2x128xf32>
    %c0_17 = arith.constant 0 : index
    %c0_18 = arith.constant 0 : index
    %c0_19 = arith.constant 0 : index
    %c0_20 = arith.constant 0 : index
    %28 = vector.load %arg7[%c0_17, %c0_18, %c0_19, %c0_20] : memref<1x3x2x128xf32, #tpu.memory_space<vmem>>, vector<1x1x2x128xf32>
    %29 = vector.shape_cast %28 : vector<1x1x2x128xf32> to vector<2x128xf32>
    %30 = vector.shape_cast %27 : vector<2x128xf32> to vector<1x1x2x128xf32>
    tpu.vector_store %arg7[%c0_17, %c0_18, %c0_19, %c0_20], %30 {strides = array<i32>} : memref<1x3x2x128xf32, #tpu.memory_space<vmem>>, vector<1x1x2x128xf32>,
    %c1_21 = arith.constant 1 : index
    %c0_22 = arith.constant 0 : index
    %c0_23 = arith.constant 0 : index
    %31 = vector.load %arg5[%c1_21, %c0_22, %c0_23] : memref<2x2x128xf32, #tpu.memory_space<vmem>>, vector<1x2x128xf32>
    %32 = vector.shape_cast %31 : vector<1x2x128xf32> to vector<2x128xf32>
    %33 = arith.mulf %32, %24 : vector<2x128xf32>
    %c0_24 = arith.constant 0 : index
    %c1_25 = arith.constant 1 : index
    %c0_26 = arith.constant 0 : index
    %c0_27 = arith.constant 0 : index
    %34 = vector.load %arg7[%c0_24, %c1_25, %c0_26, %c0_27] : memref<1x3x2x128xf32, #tpu.memory_space<vmem>>, vector<1x1x2x128xf32>
    %35 = vector.shape_cast %34 : vector<1x1x2x128xf32> to vector<2x128xf32>
    %36 = vector.shape_cast %33 : vector<2x128xf32> to vector<1x1x2x128xf32>
    tpu.vector_store %arg7[%c0_24, %c1_25, %c0_26, %c0_27], %36 {strides = array<i32>} : memref<1x3x2x128xf32, #tpu.memory_space<vmem>>, vector<1x1x2x128xf32>,
    %c0_28 = arith.constant 0 : index
    %c2_29 = arith.constant 2 : index
    %c0_30 = arith.constant 0 : index
    %c0_31 = arith.constant 0 : index
    %37 = vector.load %arg7[%c0_28, %c2_29, %c0_30, %c0_31] : memref<1x3x2x128xf32, #tpu.memory_space<vmem>>, vector<1x1x2x128xf32>
    %38 = vector.shape_cast %37 : vector<1x1x2x128xf32> to vector<2x128xf32>
    %39 = vector.shape_cast %24 : vector<2x128xf32> to vector<1x1x2x128xf32>
    tpu.vector_store %arg7[%c0_28, %c2_29, %c0_30, %c0_31], %39 {strides = array<i32>} : memref<1x3x2x128xf32, #tpu.memory_space<vmem>>, vector<1x1x2x128xf32>,
    %40 = tpu.iota {dimensions = array<i32: 0>} : vector<2x128xi32>
    %c2_i32 = arith.constant 2 : i32
    %41 = arith.muli %arg0, %c2_i32 : i32
    %42 = vector.broadcast %41 : i32 to vector<2x128xi32>
    %43 = arith.addi %40, %42 : vector<2x128xi32>
    %c0_32 = arith.constant 0 : index
    %44 = memref.load %arg4[%c0_32] : memref<1xi32, #tpu.memory_space<smem>>
    %45 = vector.broadcast %44 : i32 to vector<2x128xi32>
    %46 = arith.cmpi slt, %43, %45 : vector<2x128xi32>
    %cst_33 = arith.constant 0.000000e+00 : f32
    %47 = vector.broadcast %cst_33 : f32 to vector<2x128xf32>
    %48 = arith.select %46, %24, %47 : vector<2x128xi1>, vector<2x128xf32>
    %cst_34 = arith.constant dense<0.000000e+00> : vector<128xf32>
    %49 = vector.multi_reduction <add>, %48, %cst_34 [0] : vector<2x128xf32> to vector<128xf32>
    %50 = vector.shape_cast %49 : vector<128xf32> to vector<1x128xf32>
    %c0_35 = arith.constant 0 : index
    %c0_36 = arith.constant 0 : index
    %c0_37 = arith.constant 0 : index
    %c0_38 = arith.constant 0 : index
    %51 = vector.load %arg8[%c0_35, %c0_36, %c0_37, %c0_38] : memref<1x1x1x128xf32, #tpu.memory_space<vmem>>, vector<1x1x1x128xf32>
    %52 = vector.shape_cast %51 : vector<1x1x1x128xf32> to vector<1x128xf32>
    %53 = vector.shape_cast %50 : vector<1x128xf32> to vector<1x1x1x128xf32>
    tpu.vector_store %arg8[%c0_35, %c0_36, %c0_37, %c0_38], %53 {strides = array<i32>} : memref<1x1x1x128xf32, #tpu.memory_space<vmem>>, vector<1x1x1x128xf32>,
    return
  }
  func.func @transform_0(%arg0: i32, %arg1: i32) -> i32 {
    %c0_i32 = arith.constant 0 : i32
    %c0_i32_0 = arith.constant 0 : i32
    return %c0_i32 : i32
  }
  func.func @transform_1(%arg0: i32, %arg1: i32) -> i32 {
    %c0_i32 = arith.constant 0 : i32
    %c0_i32_0 = arith.constant 0 : i32
    return %c0_i32 : i32
  }
  func.func @transform_2(%arg0: i32, %arg1: i32) -> i32 {
    %c0_i32 = arith.constant 0 : i32
    %c0_i32_0 = arith.constant 0 : i32
    return %c0_i32 : i32
  }
  func.func @transform_3(%arg0: i32, %arg1: i32) -> (i32, i32, i32) {
    %c0_i32 = arith.constant 0 : i32
    %c0_i32_0 = arith.constant 0 : i32
    %c0_i32_1 = arith.constant 0 : i32
    return %c0_i32, %arg0, %c0_i32_0 : i32, i32, i32
  }
  func.func @transform_4(%arg0: i32, %arg1: i32) -> (i32, i32, i32, i32) {
    %c0_i32 = arith.constant 0 : i32
    %c0_i32_0 = arith.constant 0 : i32
    %c0_i32_1 = arith.constant 0 : i32
    return %arg1, %c0_i32, %arg0, %c0_i32_0 : i32, i32, i32, i32
  }
  func.func @transform_5(%arg0: i32, %arg1: i32) -> (i32, i32, i32, i32) {
    %c0_i32 = arith.constant 0 : i32
    %c0_i32_0 = arith.constant 0 : i32
    %c0_i32_1 = arith.constant 0 : i32
    return %arg1, %c0_i32, %arg0, %c0_i32_0 : i32, i32, i32, i32
  }
  func.func @transform_6(%arg0: i32, %arg1: i32) -> (i32, i32, i32, i32) {
    %c0_i32 = arith.constant 0 : i32
    %c0_i32_0 = arith.constant 0 : i32
    %c0_i32_1 = arith.constant 0 : i32
    return %arg1, %arg0, %c0_i32, %c0_i32_0 : i32, i32, i32, i32
  }
}

</mosaic_0001>

<llo_original>
// kernel: tpu_custom_call.1
$region0: #{tpu_custom_call.1}
  #allocation0 [shape = 'u32[]', space=smem, size = 0x4, offset = 0x4, fixed_abs, tag = 'smem constant byte address 0x4 - core index']
  #allocation1 [shape = 'u32[144,128]{1,0:T(1,128)}', space=vmem, size = 0x12000, scoped, tag = 'internal scratch']
  #allocation2 [shape = 'f32[1]{0:T(128)S(6)}', space=smem, size = 0x200, scoped, tag = 'scoped memory for tpu_custom_call.1']
  #allocation3 [shape = 's32[1]{0:T(128)S(6)}', space=smem, size = 0x200, scoped, tag = 'scoped memory for tpu_custom_call.1']
  %s0 = inlined_call_operand.vmem [shape: f32[3], index: 0, kind: input, shape index: {}]
  %s1 = inlined_call_operand.<no memory space> [shape: f32[1], index: 1, kind: input, shape index: {}]
  %s2 = inlined_call_operand.<no memory space> [shape: s32[1], index: 2, kind: input, shape index: {}]
  %s3 = inlined_call_operand.vmem [shape: f32[2,2,128], index: 3, kind: input, shape index: {}]
  %s4 = inlined_call_operand.hbm [shape: f32[2,3,2,128], index: 4, kind: input, shape index: {}]
  %s5 = inlined_call_operand.hbm [shape: f32[2,3,2,128], index: 5, kind: output, shape index: {0}]
  %s6 = inlined_call_operand.hbm [shape: f32[2,1,1,128], index: 6, kind: output, shape index: {1}]
  %7 = xla_tuple %s5, %s6
  %s8 = sld [smem:[#allocation0]]
  $region69: #{tpu_custom_call.1} parent=0
    _
  %s10 = ssub.s32 1, %s8
  %s11 = scalar_select 0, %s10, %s8
  %12 = sst [smem:[#allocation2]] %s1
  %13 = sst [smem:[#allocation3]] %s2
  $region1: #{tpu_custom_call.1} parent=0
    #allocation4 [shape = 'u8[512]{0}', space=smem, size = 0x200, scoped, tag = 'input window, operand 0, single buffered']
    #allocation5 [shape = 's32[2]{0}', space=sflag, size = 0x8, scoped, tag = 'scoped memory for tpu_custom_call.1']
    #allocation6 [shape = 's32[2]{0}', space=sflag, size = 0x8, scoped, tag = 'scoped memory for tpu_custom_call.1']
    #allocation7 [shape = 's32[2]{0}', space=sflag, size = 0x8, scoped, tag = 'scoped memory for tpu_custom_call.1']
    #allocation8 [shape = 'u8[6144]{0}', space=vmem, size = 0x1800, scoped, tag = 'input window, operand 4']
    #allocation9 [shape = 'u8[6144]{0}', space=vmem, size = 0x1800, scoped, tag = 'output window, operand 0']
    #allocation10 [shape = 'u8[1024]{0}', space=vmem, size = 0x400, scoped, tag = 'output window, operand 1']
    #allocation11 [shape = 's32[2]{0}', space=sflag, size = 0x8, scoped, tag = 'scoped memory for tpu_custom_call.1']
    %14 = vsyncpa [#allocation7], 0
    %15 = vsyncpa [#allocation5], 0
    %s16 = scalar_lea.sflag [#allocation5], 1
    %17 = vsyncpa %s16, 0
    %18 = vsyncpa [#allocation6], 0
    %s19 = scalar_lea.sflag [#allocation6], 1
    %20 = vsyncpa %s19, 0
    %21 = vsyncpa [#allocation11], 0
    %s22 = scalar_lea.sflag [#allocation11], 1
    %23 = vsyncpa %s22, 0
    loop: start=0, step=1, limit=4
    $region2: #{tpu_custom_call.1} parent=1 // loop_pre_header
      _
    $region3: #{tpu_custom_call.1} parent=1 // loop_header
      %s25 = sphi 0, %s29
      %p26 = scmp.ge.s32.totalorder %s25, 4
      %s32 = sphi 0, %s44
      %s33 = sphi 0, %s40
      %s34 = sphi 0, %s32
      %s35 = sphi 0, %s33
      %s36 = sphi 0, %s34
      %s37 = sphi 0, %s35
      %s45 = sphi 0, %s45
      %s47 = sphi 0, %s45
      %s48 = sphi 0, %s47
      %s62 = sphi 0, %s48
      %s66 = sphi 0, %s66
      %s68 = sphi 0, %s66
      %s69 = sphi 0, %s68
      %s83 = sphi 0, %s69
      %s87 = sphi 0, %s87
      %s89 = sphi 0, %s87
      %s90 = sphi 0, %s89
      %s104 = sphi 0, %s90
      %s110 = sphi 0, %s112
      %s113 = sphi 0, %s110
      %s114 = sphi 0, %s113
      %s130 = sphi 0, %s114
      %s138 = sphi 0, %s140
      %s141 = sphi 0, %s138
      %s142 = sphi 0, %s141
      %s158 = sphi 0, %s142
      %s166 = sphi 0, %s168
      %s169 = sphi 0, %s166
      %s170 = sphi 0, %s169
      %s186 = sphi 0, %s170
      %s194 = sphi 0, %s196
      %s197 = sphi 0, %s194
      %s198 = sphi 0, %s197
      %s214 = sphi 0, %s198
    $region4: #{tpu_custom_call.1} parent=1 // loop_header_branch
      %28 = sbr.rel (%p26) target = $region8
    $region5: #{tpu_custom_call.1} parent=1 // loop_body
      %s30 = ssub.s32 %s25, 1
      %s31 = ssub.s32 %s25, 2
      %s38 = sadd.s32 1, %s33
      %p39 = scmp.ge.s32.totalorder %s38, 2
      %s40 = scalar_select %p39, 0, %s38
      %s41 = sadd.s32 1, %s32
      %s42 = scalar_select %p39, %s41, %s32
      %p43 = scmp.ge.s32.totalorder %s42, 1
      %s44 = scalar_select %p43, 0, %s42
      %s46 = sadd.s32 %s45, 1
      %p49 = scmp.eq.s32.totalorder %s25, 1
      %p50 = scmp.ne.s32.totalorder %s45, %s47
      %p51 = scmp.eq.s32.totalorder %s25, 0
      %p52 = por %p50, %p51
      %p53 = scmp.ne.s32.totalorder %s45, %s47
      %p54 = scmp.eq.s32.totalorder %s30, 1
      %p55 = por %p53, %p54
      %p56 = scmp.ne.s32.totalorder %s47, %s48
      %p57 = scmp.eq.s32.totalorder %s30, 0
      %p58 = por %p56, %p57
      %p59 = scmp.ne.s32.totalorder %s47, %s48
      %p60 = scmp.eq.s32.totalorder %s31, 1
      %p61 = por %p59, %p60
      %p63 = scmp.ne.s32.totalorder %s48, %s62
      %p64 = scmp.eq.s32.totalorder %s31, 0
      %p65 = por %p63, %p64
      %s67 = sadd.s32 %s66, 1
      %p70 = scmp.eq.s32.totalorder %s25, 1
      %p71 = scmp.ne.s32.totalorder %s66, %s68
      %p72 = scmp.eq.s32.totalorder %s25, 0
      %p73 = por %p71, %p72
      %p74 = scmp.ne.s32.totalorder %s66, %s68
      %p75 = scmp.eq.s32.totalorder %s30, 1
      %p76 = por %p74, %p75
      %p77 = scmp.ne.s32.totalorder %s68, %s69
      %p78 = scmp.eq.s32.totalorder %s30, 0
      %p79 = por %p77, %p78
      %p80 = scmp.ne.s32.totalorder %s68, %s69
      %p81 = scmp.eq.s32.totalorder %s31, 1
      %p82 = por %p80, %p81
      %p84 = scmp.ne.s32.totalorder %s69, %s83
      %p85 = scmp.eq.s32.totalorder %s31, 0
      %p86 = por %p84, %p85
      %s88 = sadd.s32 %s87, 1
      %p91 = scmp.eq.s32.totalorder %s25, 1
      %p92 = scmp.ne.s32.totalorder %s87, %s89
      %p93 = scmp.eq.s32.totalorder %s25, 0
      %p94 = por %p92, %p93
      %p95 = scmp.ne.s32.totalorder %s87, %s89
      %p96 = scmp.eq.s32.totalorder %s30, 1
      %p97 = por %p95, %p96
      %p98 = scmp.ne.s32.totalorder %s89, %s90
      %p99 = scmp.eq.s32.totalorder %s30, 0
      %p100 = por %p98, %p99
      %p101 = scmp.ne.s32.totalorder %s89, %s90
      %p102 = scmp.eq.s32.totalorder %s31, 1
      %p103 = por %p101, %p102
      %p105 = scmp.ne.s32.totalorder %s90, %s104
      %p106 = scmp.eq.s32.totalorder %s31, 0
      %p107 = por %p105, %p106
      %s108 = ssub.s32 %s32, %s44
      %p109 = scmp.eq.s32.totalorder %s108, 0
      %s111 = sadd.s32 %s110, 1
      %s112 = scalar_select %p109, %s110, %s111
      %p115 = pneg %p109
      %p116 = scmp.eq.s32.totalorder %s25, 1
      %p117 = por %p115, %p116
      %p118 = scmp.ne.s32.totalorder %s110, %s113
      %p119 = scmp.eq.s32.totalorder %s25, 0
      %p120 = por %p118, %p119
      %p121 = scmp.ne.s32.totalorder %s110, %s113
      %p122 = scmp.eq.s32.totalorder %s30, 1
      %p123 = por %p121, %p122
      %p124 = scmp.ne.s32.totalorder %s113, %s114
      %p125 = scmp.eq.s32.totalorder %s30, 0
      %p126 = por %p124, %p125
      %p127 = scmp.ne.s32.totalorder %s113, %s114
      %p128 = scmp.eq.s32.totalorder %s31, 1
      %p129 = por %p127, %p128
      %p131 = scmp.ne.s32.totalorder %s114, %s130
      %p132 = scmp.eq.s32.totalorder %s31, 0
      %p133 = por %p131, %p132
      %s134 = ssub.s32 %s33, %s40
      %s135 = ssub.s32 %s32, %s44
      %s136 = sor.u32 %s134, %s135
      %p137 = scmp.eq.s32.totalorder %s136, 0
      %s139 = sadd.s32 %s138, 1
      %s140 = scalar_select %p137, %s138, %s139
      %p143 = pneg %p137
      %p144 = scmp.eq.s32.totalorder %s25, 1
      %p145 = por %p143, %p144
      %p146 = scmp.ne.s32.totalorder %s138, %s141
      %p147 = scmp.eq.s32.totalorder %s25, 0
      %p148 = por %p146, %p147
      %p149 = scmp.ne.s32.totalorder %s138, %s141
      %p150 = scmp.eq.s32.totalorder %s30, 1
      %p151 = por %p149, %p150
      %p152 = scmp.ne.s32.totalorder %s141, %s142
      %p153 = scmp.eq.s32.totalorder %s30, 0
      %p154 = por %p152, %p153
      %p155 = scmp.ne.s32.totalorder %s141, %s142
      %p156 = scmp.eq.s32.totalorder %s31, 1
      %p157 = por %p155, %p156
      %p159 = scmp.ne.s32.totalorder %s142, %s158
      %p160 = scmp.eq.s32.totalorder %s31, 0
      %p161 = por %p159, %p160
      %s162 = ssub.s32 %s33, %s40
      %s163 = ssub.s32 %s32, %s44
      %s164 = sor.u32 %s162, %s163
      %p165 = scmp.eq.s32.totalorder %s164, 0
      %s167 = sadd.s32 %s166, 1
      %s168 = scalar_select %p165, %s166, %s167
      %p171 = pneg %p165
      %p172 = scmp.eq.s32.totalorder %s25, 1
      %p173 = por %p171, %p172
      %p174 = scmp.ne.s32.totalorder %s166, %s169
      %p175 = scmp.eq.s32.totalorder %s25, 0
      %p176 = por %p174, %p175
      %p177 = scmp.ne.s32.totalorder %s166, %s169
      %p178 = scmp.eq.s32.totalorder %s30, 1
      %p179 = por %p177, %p178
      %p180 = scmp.ne.s32.totalorder %s169, %s170
      %p181 = scmp.eq.s32.totalorder %s30, 0
      %p182 = por %p180, %p181
      %p183 = scmp.ne.s32.totalorder %s169, %s170
      %p184 = scmp.eq.s32.totalorder %s31, 1
      %p185 = por %p183, %p184
      %p187 = scmp.ne.s32.totalorder %s170, %s186
      %p188 = scmp.eq.s32.totalorder %s31, 0
      %p189 = por %p187, %p188
      %s190 = ssub.s32 %s33, %s40
      %s191 = ssub.s32 %s32, %s44
      %s192 = sor.u32 %s190, %s191
      %p193 = scmp.eq.s32.totalorder %s192, 0
      %s195 = sadd.s32 %s194, 1
      %s196 = scalar_select %p193, %s194, %s195
      %p199 = pneg %p193
      %p200 = scmp.eq.s32.totalorder %s25, 1
      %p201 = por %p199, %p200
      %p202 = scmp.ne.s32.totalorder %s194, %s197
      %p203 = scmp.eq.s32.totalorder %s25, 0
      %p204 = por %p202, %p203
      %p205 = scmp.ne.s32.totalorder %s194, %s197
      %p206 = scmp.eq.s32.totalorder %s30, 1
      %p207 = por %p205, %p206
      %p208 = scmp.ne.s32.totalorder %s197, %s198
      %p209 = scmp.eq.s32.totalorder %s30, 0
      %p210 = por %p208, %p209
      %p211 = scmp.ne.s32.totalorder %s197, %s198
      %p212 = scmp.eq.s32.totalorder %s31, 1
      %p213 = por %p211, %p212
      %p215 = scmp.ne.s32.totalorder %s198, %s214
      %p216 = scmp.eq.s32.totalorder %s31, 0
      %p217 = por %p215, %p216
      %p218 = scmp.le.s32.totalorder 1, %s25
      %p219 = scmp.lt.s32.totalorder %s25, 3
      %p220 = pnand %p218, %p219
      %p221 = pneg %p220
      // Predicated region
      $region9: #{tpu_custom_call.1} parent=5 // pred_check
        _
      $region10: #{tpu_custom_call.1} parent=5 // pred_check_branch
        %223 = sbr.rel (%p220) target = $region12
      $region11: #{tpu_custom_call.1} parent=5 // pred_region
        %s224 = ssub.s32 %s25, 1
        // Predicated region
        $region13: #{tpu_custom_call.1} parent=11 // pred_check
          %p225 = pneg %p58
        $region14: #{tpu_custom_call.1} parent=11 // pred_check_branch
          %227 = sbr.rel (%p225) target = $region16
        $region15: #{tpu_custom_call.1} parent=11 // pred_region
          %s229 = ssub.s32 16, 16
          %230 = vsyncadd [#allocation7], %s229
          %s232 = sshll.u32 %s0, 4
          %s233 = int_to_ptr.vmem [resolvable:$true] %s232
          %235 = dma.vmem_to_smem %s233, 16, [#allocation4], [#allocation7]
        $region16: #{tpu_custom_call.1} parent=11 // pred_fallthru
          _
        // Predicated region
        $region17: #{tpu_custom_call.1} parent=11 // pred_check
          %p236 = pneg %p79
        $region18: #{tpu_custom_call.1} parent=11 // pred_check_branch
          %238 = sbr.rel (%p236) target = $region20
        $region19: #{tpu_custom_call.1} parent=11 // pred_region
          _
        $region20: #{tpu_custom_call.1} parent=11 // pred_fallthru
          _
        // Predicated region
        $region21: #{tpu_custom_call.1} parent=11 // pred_check
          %p239 = pneg %p100
        $region22: #{tpu_custom_call.1} parent=11 // pred_check_branch
          %241 = sbr.rel (%p239) target = $region24
        $region23: #{tpu_custom_call.1} parent=11 // pred_region
          _
        $region24: #{tpu_custom_call.1} parent=11 // pred_fallthru
          _
        // Predicated region
        $region25: #{tpu_custom_call.1} parent=11 // pred_check
          %p242 = pneg %p126
        $region26: #{tpu_custom_call.1} parent=11 // pred_check_branch
          %244 = sbr.rel (%p242) target = $region28
        $region27: #{tpu_custom_call.1} parent=11 // pred_region
          %p245 = scmp.lt.s32.totalorder %s34, 0
          %s246 = scalar_select %p245, %s34, 0
          %s247 = smul.addr %s246, 2
          %s248 = scalar_lea.vmem %s3, %s247
        $region28: #{tpu_custom_call.1} parent=11 // pred_fallthru
          _
      $region12: #{tpu_custom_call.1} parent=5 // pred_fallthru
        _
      %p249 = scmp.lt.s32.totalorder %s25, 2
      // Predicated region
      $region29: #{tpu_custom_call.1} parent=5 // pred_check
        %p250 = pneg %p249
      $region30: #{tpu_custom_call.1} parent=5 // pred_check_branch
        %252 = sbr.rel (%p250) target = $region32
      $region31: #{tpu_custom_call.1} parent=5 // pred_region
        // Predicated region
        $region33: #{tpu_custom_call.1} parent=31 // pred_check
          %p253 = pneg %p148
        $region34: #{tpu_custom_call.1} parent=31 // pred_check_branch
          %255 = sbr.rel (%p253) target = $region36
        $region35: #{tpu_custom_call.1} parent=31 // pred_region
          %s256 = sand.u32 %s138, 1
          %s257 = scalar_lea.sflag [#allocation5], %s256
          %s258 = sand.u32 %s138, 1
          %s259 = smul.addr %s258, 6
          %s260 = scalar_lea.vmem [#allocation8], %s259
          %s262 = ssub.s32 96, 96
          %263 = vsyncadd %s257, %s262
          %s264 = smul.addr %s33, 3
          %s265 = sadd.s32 %s32, %s264
          %s266 = smul.addr %s265, 32
          %s267 = scalar_lea.hbm %s4, %s266
          %s268 = sshll.u32 %s260, 4
          %s269 = int_to_ptr.vmem [resolvable:$true] %s268
          %274 = dma.hbm_to_vmem [thread:$0]  %s267, 96, %s269, %s257, 32, 32, 2
        $region36: #{tpu_custom_call.1} parent=31 // pred_fallthru
          _
      $region32: #{tpu_custom_call.1} parent=5 // pred_fallthru
        _
      %p275 = scmp.le.s32.totalorder 1, %s25
      %p276 = scmp.lt.s32.totalorder %s25, 3
      %p277 = pnand %p275, %p276
      %p278 = pneg %p277
      // Predicated region
      $region37: #{tpu_custom_call.1} parent=5 // pred_check
        _
      $region38: #{tpu_custom_call.1} parent=5 // pred_check_branch
        %280 = sbr.rel (%p277) target = $region40
      $region39: #{tpu_custom_call.1} parent=5 // pred_region
        %s281 = ssub.s32 %s25, 1
        // Predicated region
        $region41: #{tpu_custom_call.1} parent=39 // pred_check
          %p282 = pneg %p58
        $region42: #{tpu_custom_call.1} parent=39 // pred_check_branch
          %284 = sbr.rel (%p282) target = $region44
        $region43: #{tpu_custom_call.1} parent=39 // pred_region
          %285 = dma.done [#allocation7], 16
        $region44: #{tpu_custom_call.1} parent=39 // pred_fallthru
          _
        %s286 = sand.u32 %s141, 1
        %s287 = scalar_lea.sflag [#allocation5], %s286
        %s288 = sand.u32 %s141, 1
        %s289 = smul.addr %s288, 6
        %s290 = scalar_lea.vmem [#allocation8], %s289
        // Predicated region
        $region45: #{tpu_custom_call.1} parent=39 // pred_check
          %p291 = pneg %p154
        $region46: #{tpu_custom_call.1} parent=39 // pred_check_branch
          %293 = sbr.rel (%p291) target = $region48
        $region47: #{tpu_custom_call.1} parent=39 // pred_region
          %294 = dma.done %s287, 96
        $region48: #{tpu_custom_call.1} parent=39 // pred_fallthru
          _
        %295 = sfence
        %p296 = pneg %p58
        %p297 = pneg %p55
        %p298 = pneg %p79
        %p299 = pneg %p76
        %p300 = pneg %p100
        %p301 = pneg %p97
        %p302 = scmp.lt.s32.totalorder %s34, 0
        %s303 = scalar_select %p302, %s34, 0
        %s304 = smul.addr %s303, 2
        %s305 = scalar_lea.vmem %s3, %s304
        %p306 = pneg %p126
        %p307 = pneg %p123
        %s308 = sand.u32 %s141, 1
        %s309 = scalar_lea.sflag [#allocation5], %s308
        %s310 = sand.u32 %s141, 1
        %s311 = smul.addr %s310, 6
        %s312 = scalar_lea.vmem [#allocation8], %s311
        %p313 = pneg %p154
        %p314 = pneg %p151
        %p315 = pneg %p182
        %p316 = pneg %p179
        %s317 = sand.u32 %s169, 1
        %s318 = scalar_lea.sflag [#allocation6], %s317
        %s319 = sand.u32 %s169, 1
        %s320 = smul.addr %s319, 6
        %s321 = scalar_lea.vmem [#allocation9], %s320
        %p322 = pneg %p210
        %p323 = pneg %p207
        %s324 = sand.u32 %s197, 1
        %s325 = scalar_lea.sflag [#allocation11], %s324
        %s326 = sand.u32 %s197, 1
        %s327 = scalar_lea.vmem [#allocation10], %s326
        %p328 = scmp.lt.s32.totalorder %s34, 0
        %s329 = scalar_select %p328, %s34, 0
        %s330 = smul.addr %s329, 2
        %s331 = scalar_lea.vmem %s3, %s330
        %v332 = vld [vmem:[%s290] sm:$0x3]
        %s333 = sld [smem:[#allocation4]]
        %v334 = vstv %s333
        %v335 = vmul.f32 %v332, %v334
        %s336 = scalar_lea.vmem %s290, 2 [#allocation8]
        %v337 = vld [vmem:[%s336] sm:$0x3]
        %s338 = sld [smem:[#allocation4 + $0x1]]
        %v339 = vstv %s338
        %v340 = vmul.f32 %v337, %v339
        %v341 = vadd.f32 %v335, %v340
        %s342 = scalar_lea.vmem %s290, 4 [#allocation8]
        %v343 = vld [vmem:[%s342] sm:$0x3]
        %s344 = sld [smem:[#allocation4 + $0x2]]
        %v345 = vstv %s344
        %v346 = vmul.f32 %v343, %v345
        %v347 = vadd.f32 %v341, %v346
        %s348 = sld [smem:[#allocation2]]
        %v349 = vstv %s348
        %v350 = vadd.f32 %v347, %v349
        %v351 = vadd.f32 %v350, 0.1
        %v352 = vrcp.pop %v351
        %v353 = vmul.f32 %v352, 1000.0
        %v354 = vld [vmem:[%s331] sm:$0x3]
        %v355 = vmul.f32 %v354, %v353
        %356 = vst [vmem:[%s321] sm:$0x3] %v355
        %s357 = scalar_lea.vmem %s331, 2
        %v358 = vld [vmem:[%s357] sm:$0x3]
        %v359 = vmul.f32 %v358, %v353
        %s360 = scalar_lea.vmem %s321, 2 [#allocation9]
        %361 = vst [vmem:[%s360] sm:$0x3] %v359
        %s362 = scalar_lea.vmem %s321, 4 [#allocation9]
        %363 = vst [vmem:[%s362] sm:$0x3] %v353
        %v364 = vlaneseq
        %v365 = vshrl.u32 %v364, 7
        %s366 = smul.u32 %s34, 2
        %v367 = vstv %s366
        %v368 = vadd.s32 %v365, %v367
        %s369 = sld [smem:[#allocation3]]
        %v370 = vstv %s369
        %vm371 = vcmp.lt.s32.totalorder %v368, %v370
        %v372 = vsel %vm371, %v353, 0.0
        %vm373 = vcmask 1041408
        %v374 = vsel %vm373, %v372, 0.0
        %v375 = vrot.slane %v374, 4
        %v376 = vadd.f32 %v374, %v375
        %v377 = vrot.slane %v376, 2
        %v378 = vadd.f32 %v376, %v377
        %v379 = vrot.slane %v378, 1
        %v380 = vadd.f32 %v378, %v379
        %381 = vst [vmem:[%s327] sm:$0x1] %v380
        %s382 = sand.u32 %s169, 1
        %s383 = scalar_lea.sflag [#allocation6], %s382
        %s384 = sand.u32 %s169, 1
        %s385 = smul.addr %s384, 6
        %s386 = scalar_lea.vmem [#allocation9], %s385
        %s387 = sand.u32 %s197, 1
        %s388 = scalar_lea.sflag [#allocation11], %s387
        %s389 = sand.u32 %s197, 1
        %s390 = scalar_lea.vmem [#allocation10], %s389
        // Predicated region
        $region49: #{tpu_custom_call.1} parent=39 // pred_check
          %p391 = pneg %p179
        $region50: #{tpu_custom_call.1} parent=39 // pred_check_branch
          %393 = sbr.rel (%p391) target = $region52
        $region51: #{tpu_custom_call.1} parent=39 // pred_region
          %s395 = ssub.s32 96, 96
          %396 = vsyncadd %s383, %s395
          %s397 = smul.addr %s35, 3
          %s398 = sadd.s32 %s34, %s397
          %s399 = smul.addr %s398, 32
          %s400 = scalar_lea.hbm %s5, %s399
          %s401 = sshll.u32 %s386, 4
          %s402 = int_to_ptr.vmem [resolvable:$true] %s401
          %407 = dma.vmem_to_hbm [thread:$0]  %s402, 96, %s400, %s383, 32, 32, 2
        $region52: #{tpu_custom_call.1} parent=39 // pred_fallthru
          _
        // Predicated region
        $region53: #{tpu_custom_call.1} parent=39 // pred_check
          %p408 = pneg %p207
        $region54: #{tpu_custom_call.1} parent=39 // pred_check_branch
          %410 = sbr.rel (%p408) target = $region56
        $region55: #{tpu_custom_call.1} parent=39 // pred_region
          %s412 = ssub.s32 16, 16
          %413 = vsyncadd %s388, %s412
          %s414 = sadd.s32 %s34, %s35
          %s415 = smul.addr %s414, 16
          %s416 = scalar_lea.hbm %s6, %s415
          %s418 = sshll.u32 %s390, 4
          %s419 = int_to_ptr.vmem [resolvable:$true] %s418
          %421 = dma.vmem_to_hbm [thread:$0]  %s419, 16, %s416, %s388
        $region56: #{tpu_custom_call.1} parent=39 // pred_fallthru
          _
      $region40: #{tpu_custom_call.1} parent=5 // pred_fallthru
        _
      %p422 = scmp.le.s32.totalorder 2, %s25
      // Predicated region
      $region57: #{tpu_custom_call.1} parent=5 // pred_check
        %p423 = pneg %p422
      $region58: #{tpu_custom_call.1} parent=5 // pred_check_branch
        %425 = sbr.rel (%p423) target = $region60
      $region59: #{tpu_custom_call.1} parent=5 // pred_region
        %s426 = ssub.s32 %s25, 2
        // Predicated region
        $region61: #{tpu_custom_call.1} parent=59 // pred_check
          %p427 = pneg %p185
        $region62: #{tpu_custom_call.1} parent=59 // pred_check_branch
          %429 = sbr.rel (%p427) target = $region64
        $region63: #{tpu_custom_call.1} parent=59 // pred_region
          %s430 = sand.u32 %s170, 1
          %s431 = scalar_lea.sflag [#allocation6], %s430
          %s432 = sand.u32 %s170, 1
          %s433 = smul.addr %s432, 6
          %s434 = scalar_lea.vmem [#allocation9], %s433
          %435 = dma.done %s431, 96
        $region64: #{tpu_custom_call.1} parent=59 // pred_fallthru
          _
        // Predicated region
        $region65: #{tpu_custom_call.1} parent=59 // pred_check
          %p436 = pneg %p213
        $region66: #{tpu_custom_call.1} parent=59 // pred_check_branch
          %438 = sbr.rel (%p436) target = $region68
        $region67: #{tpu_custom_call.1} parent=59 // pred_region
          %s439 = sand.u32 %s198, 1
          %s440 = scalar_lea.sflag [#allocation11], %s439
          %s441 = sand.u32 %s198, 1
          %s442 = scalar_lea.vmem [#allocation10], %s441
          %443 = dma.done %s440, 16
        $region68: #{tpu_custom_call.1} parent=59 // pred_fallthru
          _
      $region60: #{tpu_custom_call.1} parent=5 // pred_fallthru
        _
    $region6: #{tpu_custom_call.1} parent=1 // loop_footer
      %s29 = sadd.s32 1, %s25
    $region7: #{tpu_custom_call.1} parent=1 // loop_footer_branch
      %24 = sbr.rel target = $region3
    $region8: #{tpu_custom_call.1} parent=1 // loop_exit
      _
    %444 = vsyncpa [#allocation5], 1
    %s445 = scalar_lea.sflag [#allocation5], 1
    %446 = vsyncpa %s445, 1
    %447 = vsyncpa [#allocation6], 1
    %s448 = scalar_lea.sflag [#allocation6], 1
    %449 = vsyncpa %s448, 1
    %450 = vsyncpa [#allocation11], 1
    %s451 = scalar_lea.sflag [#allocation11], 1
    %452 = vsyncpa %s451, 1
    %453 = vsyncpa [#allocation7], 1
    %s454 = scalar_lea.sflag [#allocation7], 1
    %455 = vsyncpa %s454, 1

</llo_original>
